<compile_context>
chip_gen: v6e
topology: v6e:2x2x1
jax: 0.10.0
libtpu: 0.0.40
codegen_flags: <defaults>
</compile_context>

<pallas_src>
import functools

import jax
import jax.numpy as jnp
from jax.experimental import pallas as pl
from jax.experimental.pallas import tpu as pltpu


def _round_up(a, b):
    return (a + b - 1) // b * b


def _input_layer_kernel(body_ref, halo_ref, w_ref, b_ref, o_ref, *, t_tile, ksize):
    """One (batch, time-tile) grid step.

    body_ref: (T_tile, Fp)  compute-dtype input rows of this tile
    halo_ref: (Hpad,  Fp)   first rows of the next tile (right halo)
    w_ref:    (K*Fp,  Fp)   packed per-tap weights (compute dtype)
    b_ref:    (1,     Fp)   bias (f32)
    o_ref:    (T_tile, Fp)  output tile
    """
    # (T_tile + Hpad, Fp) window covering this tile plus its right halo.
    xw = jnp.concatenate([body_ref[...], halo_ref[...]], axis=0)
    # Fold the K taps into the contraction dimension: (T_tile, K*Fp).
    lhs = jnp.concatenate([xw[k:k + t_tile, :] for k in range(ksize)], axis=1)
    # Single MXU matmul, f32 accumulation.
    acc = jnp.dot(lhs, w_ref[...], preferred_element_type=jnp.float32)
    acc = acc + b_ref[...]                       # f32 bias broadcast over rows
    o_ref[...] = jnp.maximum(acc, 0.0).astype(o_ref.dtype)


def input_layer_forward(x, weight, bias, kernel_size=7, *,
                        time_tile=256, compute_dtype=jnp.bfloat16):
    """Forward pass of InputLayer.

    x:      (B, T, F) input (batch, window_size, n_features)
    weight: (F_out, F_in, K) torch Conv1d weight layout (F_out == F_in == F)
    bias:   (F,)
    Returns (B, T_out, F); T_out == T for odd kernel_size (PyTorch behaviour).
    compute_dtype: dtype fed to the MXU (bf16 recommended); None -> x.dtype.
    """
    B, T, F = x.shape
    K = kernel_size
    pad = (K - 1) // 2
    T_out = T + 2 * pad - K + 1

    if compute_dtype is None:
        compute_dtype = x.dtype

    Fp = _round_up(F, 128)                               # lane-dense feature dim
    Hpad = max(8, _round_up(max(K - 1, 1), 8))           # sublane-aligned halo
    # Time tile: multiple of 8, at least Hpad, capped at the (rounded) output
    # length.  time_tile is a knob (256-512 is a good range on v5e/v6e; keep it
    # modest on v7x's smaller VMEM -- blocks here are well under 1 MiB anyway).
    t_tile = _round_up(max(min(time_tile, _round_up(T_out, 8)), Hpad), 8)
    nT = pl.cdiv(T_out, t_tile)
    total_T = (nT + 1) * t_tile          # nT body chunks + one spare chunk for halo

    # Zero-padded working copy of x: "same" conv padding in time plus feature
    # padding to a multiple of 128 lanes.
    # TODO(synk): fold this host-side pad/windowing into the kernel (pl.ANY +
    # pltpu.make_async_copy with boundary masking) to avoid the extra HBM pass.
    x_work = jnp.pad(x.astype(compute_dtype),
                     ((0, 0), (pad, total_T - pad - T), (0, Fp - F)))
    x4 = x_work.reshape(B, nT + 1, t_tile, Fp)
    body = x4[:, :nT]                    # (B, nT, T_tile, Fp)
    halo = x4[:, 1:, :Hpad]              # (B, nT, Hpad,  Fp)  = start of next tile

    # Pack weights: (F_out, F_in, K) -> (K, Fp_in, Fp_out) -> (K*Fp, Fp).
    w_k = jnp.transpose(weight, (2, 1, 0))
    w_k = jnp.pad(w_k, ((0, 0), (0, Fp - F), (0, Fp - F)))
    w_pack = w_k.reshape(K * Fp, Fp).astype(compute_dtype)
    b2 = jnp.pad(bias, (0, Fp - F)).reshape(1, Fp).astype(jnp.float32)

    kernel = functools.partial(_input_layer_kernel, t_tile=t_tile, ksize=K)

    out_padded = pl.pallas_call(
        kernel,
        out_shape=jax.ShapeDtypeStruct((B, nT * t_tile, Fp), x.dtype),
        grid_spec=pltpu.PrefetchScalarGridSpec(
            num_scalar_prefetch=0,
            grid=(B, nT),
            in_specs=[
                pl.BlockSpec((None, None, t_tile, Fp), lambda b, t: (b, t, 0, 0)),
                pl.BlockSpec((None, None, Hpad, Fp), lambda b, t: (b, t, 0, 0)),
                pl.BlockSpec((K * Fp, Fp), lambda b, t: (0, 0)),
                pl.BlockSpec((1, Fp), lambda b, t: (0, 0)),
            ],
            out_specs=pl.BlockSpec((None, t_tile, Fp), lambda b, t: (b, t, 0)),
        ),
        compiler_params=pltpu.CompilerParams(
            dimension_semantics=("parallel", "parallel"),
            vmem_limit_bytes=32 * 1024 * 1024,
        ),
    )(body, halo, w_pack, b2)

    return out_padded[:, :T_out, :F]


if __name__ == "__main__":
    # Small deterministic example consistent with the module:
    # x: (batch, window_size, n_features), Conv1d weight (F, F, K), bias (F,)
    B, T, F = 2, 16, 8
    K = 7

    key = jax.random.PRNGKey(0)
    kx, kw, kb = jax.random.split(key, 3)
    x = jax.random.normal(kx, (B, T, F), dtype=jnp.float32)
    weight = 0.1 * jax.random.normal(kw, (F, F, K), dtype=jnp.float32)
    bias = 0.1 * jax.random.normal(kb, (F,), dtype=jnp.float32)

    # Pure-JAX f32 reference (same math as permute -> pad -> conv1d -> relu -> permute).
    pad = (K - 1) // 2
    x_pad = jnp.pad(x, ((0, 0), (pad, pad), (0, 0)))
    T_out = T + 2 * pad - K + 1
    w_k = jnp.transpose(weight, (2, 1, 0))
    ref = jnp.zeros((B, T_out, F), jnp.float32)
    for k in range(K):
        ref = ref + jnp.einsum("bti,io->bto", x_pad[:, k:k + T_out, :], w_k[k])
    ref = jnp.maximum(ref + bias, 0.0)

    # Fast path: bf16 MXU operands, f32 accumulation (default).
    out_fast = jax.block_until_ready(input_layer_forward(x, weight, bias, kernel_size=K))
    assert out_fast.shape == (B, T, F), out_fast.shape
    assert jnp.allclose(out_fast, ref, atol=5e-2, rtol=5e-2), "bf16 path mismatch vs reference"

    # Exact path: f32 operands end to end.
    out_f32 = jax.block_until_ready(
        input_layer_forward(x, weight, bias, kernel_size=K, compute_dtype=jnp.float32))
    assert out_f32.shape == (B, T, F), out_f32.shape
    assert jnp.allclose(out_f32, ref, atol=1e-5, rtol=1e-5), "f32 path mismatch vs reference"

    print("KERNEL_OK")
</pallas_src>

<mosaic_0001>
module attributes {stable_mosaic.version = 11 : i64} {
  func.func @_input_layer_kernel(%arg0: i32, %arg1: i32, %arg2: memref<1x1x16x128xbf16, #tpu.memory_space<vmem>>, %arg3: memref<1x1x8x128xbf16, #tpu.memory_space<vmem>>, %arg4: memref<896x128xbf16, #tpu.memory_space<vmem>>, %arg5: memref<1x128xf32, #tpu.memory_space<vmem>>, %arg6: memref<1x16x128xf32, #tpu.memory_space<vmem>>) attributes {dimension_semantics = [#tpu.dimension_semantics<parallel>, #tpu.dimension_semantics<parallel>], iteration_bounds = array<i64: 2, 1>, scalar_prefetch = 0 : i64, scratch_operands = 0 : i64, tpu.core_type = #tpu.core_type<tc>, window_params = [{transform_indices = @transform_0, window_bounds = array<i64: 1, 1, 16, 128>}, {transform_indices = @transform_1, window_bounds = array<i64: 1, 1, 8, 128>}, {pipeline_mode = #tpu.pipeline_mode<synchronous>, transform_indices = @transform_2, window_bounds = array<i64: 896, 128>}, {pipeline_mode = #tpu.pipeline_mode<synchronous>, transform_indices = @transform_3, window_bounds = array<i64: 1, 128>}, {transform_indices = @transform_4, window_bounds = array<i64: 1, 16, 128>}]} {
    %c0 = arith.constant 0 : index
    %c0_0 = arith.constant 0 : index
    %c0_1 = arith.constant 0 : index
    %c0_2 = arith.constant 0 : index
    %0 = vector.load %arg2[%c0, %c0_0, %c0_1, %c0_2] : memref<1x1x16x128xbf16, #tpu.memory_space<vmem>>, vector<1x1x16x128xbf16>
    %1 = vector.shape_cast %0 : vector<1x1x16x128xbf16> to vector<16x128xbf16>
    %c0_3 = arith.constant 0 : index
    %c0_4 = arith.constant 0 : index
    %c0_5 = arith.constant 0 : index
    %c0_6 = arith.constant 0 : index
    %2 = vector.load %arg3[%c0_3, %c0_4, %c0_5, %c0_6] : memref<1x1x8x128xbf16, #tpu.memory_space<vmem>>, vector<1x1x8x128xbf16>
    %3 = vector.shape_cast %2 : vector<1x1x8x128xbf16> to vector<8x128xbf16>
    %4 = tpu.concatenate %1, %3 in 0 : vector<16x128xbf16>, vector<8x128xbf16> -> vector<24x128xbf16>
    %5 = vector.extract_strided_slice %4 {offsets = [0, 0], sizes = [16, 128], strides = [1, 1]} : vector<24x128xbf16> to vector<16x128xbf16>
    %6 = vector.extract_strided_slice %4 {offsets = [1, 0], sizes = [16, 128], strides = [1, 1]} : vector<24x128xbf16> to vector<16x128xbf16>
    %7 = vector.extract_strided_slice %4 {offsets = [2, 0], sizes = [16, 128], strides = [1, 1]} : vector<24x128xbf16> to vector<16x128xbf16>
    %8 = vector.extract_strided_slice %4 {offsets = [3, 0], sizes = [16, 128], strides = [1, 1]} : vector<24x128xbf16> to vector<16x128xbf16>
    %9 = vector.extract_strided_slice %4 {offsets = [4, 0], sizes = [16, 128], strides = [1, 1]} : vector<24x128xbf16> to vector<16x128xbf16>
    %10 = vector.extract_strided_slice %4 {offsets = [5, 0], sizes = [16, 128], strides = [1, 1]} : vector<24x128xbf16> to vector<16x128xbf16>
    %11 = vector.extract_strided_slice %4 {offsets = [6, 0], sizes = [16, 128], strides = [1, 1]} : vector<24x128xbf16> to vector<16x128xbf16>
    %12 = tpu.concatenate %5, %6, %7, %8, %9, %10, %11 in 1 : vector<16x128xbf16>, vector<16x128xbf16>, vector<16x128xbf16>, vector<16x128xbf16>, vector<16x128xbf16>, vector<16x128xbf16>, vector<16x128xbf16> -> vector<16x896xbf16>
    %c0_7 = arith.constant 0 : index
    %c0_8 = arith.constant 0 : index
    %13 = vector.load %arg4[%c0_7, %c0_8] : memref<896x128xbf16, #tpu.memory_space<vmem>>, vector<896x128xbf16>
    %cst = arith.constant dense<0.000000e+00> : vector<16x128xf32>
    %14 = tpu.matmul %12, %13, %cst {dimension_numbers = #tpu.dot_dimension_numbers<[1], [0], [0], [1], [0, 0, 1, 1], [], []>} : vector<16x896xbf16>, vector<896x128xbf16>, vector<16x128xf32> -> vector<16x128xf32>
    %c0_9 = arith.constant 0 : index
    %c0_10 = arith.constant 0 : index
    %15 = vector.load %arg5[%c0_9, %c0_10] : memref<1x128xf32, #tpu.memory_space<vmem>>, vector<1x128xf32>
    %16 = vector.broadcast %15 : vector<1x128xf32> to vector<16x128xf32>
    %17 = arith.addf %14, %16 : vector<16x128xf32>
    %cst_11 = arith.constant 0.000000e+00 : f32
    %18 = vector.broadcast %cst_11 : f32 to vector<16x128xf32>
    %19 = arith.maximumf %17, %18 : vector<16x128xf32>
    %c0_12 = arith.constant 0 : index
    %c0_13 = arith.constant 0 : index
    %c0_14 = arith.constant 0 : index
    %20 = vector.load %arg6[%c0_12, %c0_13, %c0_14] : memref<1x16x128xf32, #tpu.memory_space<vmem>>, vector<1x16x128xf32>
    %21 = vector.shape_cast %20 : vector<1x16x128xf32> to vector<16x128xf32>
    %22 = vector.shape_cast %19 : vector<16x128xf32> to vector<1x16x128xf32>
    tpu.vector_store %arg6[%c0_12, %c0_13, %c0_14], %22 {strides = array<i32>} : memref<1x16x128xf32, #tpu.memory_space<vmem>>, vector<1x16x128xf32>,
    return
  }
  func.func @transform_0(%arg0: i32, %arg1: i32) -> (i32, i32, i32, i32) {
    %c0_i32 = arith.constant 0 : i32
    %c0_i32_0 = arith.constant 0 : i32
    %c0_i32_1 = arith.constant 0 : i32
    return %arg0, %arg1, %c0_i32, %c0_i32_0 : i32, i32, i32, i32
  }
  func.func @transform_1(%arg0: i32, %arg1: i32) -> (i32, i32, i32, i32) {
    %c0_i32 = arith.constant 0 : i32
    %c0_i32_0 = arith.constant 0 : i32
    %c0_i32_1 = arith.constant 0 : i32
    return %arg0, %arg1, %c0_i32, %c0_i32_0 : i32, i32, i32, i32
  }
  func.func @transform_2(%arg0: i32, %arg1: i32) -> (i32, i32) {
    %c0_i32 = arith.constant 0 : i32
    %c0_i32_0 = arith.constant 0 : i32
    %c0_i32_1 = arith.constant 0 : i32
    return %c0_i32, %c0_i32_0 : i32, i32
  }
  func.func @transform_3(%arg0: i32, %arg1: i32) -> (i32, i32) {
    %c0_i32 = arith.constant 0 : i32
    %c0_i32_0 = arith.constant 0 : i32
    %c0_i32_1 = arith.constant 0 : i32
    return %c0_i32, %c0_i32_0 : i32, i32
  }
  func.func @transform_4(%arg0: i32, %arg1: i32) -> (i32, i32, i32) {
    %c0_i32 = arith.constant 0 : i32
    %c0_i32_0 = arith.constant 0 : i32
    return %arg0, %arg1, %c0_i32 : i32, i32, i32
  }
}

</mosaic_0001>

<llo_original>
// kernel: tpu_custom_call.1
$region0: #{tpu_custom_call.1}
  #allocation0 [shape = 'u32[]', space=smem, size = 0x4, offset = 0x4, fixed_abs, tag = 'smem constant byte address 0x4 - core index']
  #allocation1 [shape = 'u32[144,128]{1,0:T(1,128)}', space=vmem, size = 0x12000, scoped, tag = 'internal scratch']
  %s0 = inlined_call_operand.hbm [shape: bf16[2,1,16,128], index: 0, kind: input, shape index: {}]
  %s1 = inlined_call_operand.hbm [shape: bf16[2,1,8,128], index: 1, kind: input, shape index: {}]
  %s2 = inlined_call_operand.hbm [shape: bf16[896,128], index: 2, kind: input, shape index: {}]
  %s3 = inlined_call_operand.vmem [shape: f32[1,128], index: 3, kind: input, shape index: {}]
  %s4 = inlined_call_operand.hbm [shape: f32[2,16,128], index: 4, kind: output, shape index: {}]
  %s5 = sld [smem:[#allocation0]]
  $region61: #{tpu_custom_call.1} parent=0
    _
  %s7 = ssub.s32 1, %s5
  %s8 = scalar_select 0, %s7, %s5
  $region1: #{tpu_custom_call.1} parent=0
    #allocation2 [shape = 'u8[8192]{0}', space=vmem, size = 0x2000, scoped, tag = 'input window, operand 0']
    #allocation3 [shape = 's32[2]{0}', space=sflag, size = 0x8, scoped, tag = 'scoped memory for tpu_custom_call.1']
    #allocation4 [shape = 's32[2]{0}', space=sflag, size = 0x8, scoped, tag = 'scoped memory for tpu_custom_call.1']
    #allocation5 [shape = 'u8[4096]{0}', space=vmem, size = 0x1000, scoped, tag = 'input window, operand 1']
    #allocation6 [shape = 's32[2]{0}', space=sflag, size = 0x8, scoped, tag = 'scoped memory for tpu_custom_call.1']
    #allocation7 [shape = 'u8[229376]{0}', space=vmem, size = 0x38000, scoped, tag = 'input window, operand 2, single buffered']
    #allocation8 [shape = 'u8[16384]{0}', space=vmem, size = 0x4000, scoped, tag = 'output window, operand 0']
    %9 = vsyncpa [#allocation3], 0
    %s10 = scalar_lea.sflag [#allocation3], 1
    %11 = vsyncpa %s10, 0
    %12 = vsyncpa [#allocation6], 0
    %s13 = scalar_lea.sflag [#allocation6], 1
    %14 = vsyncpa %s13, 0
    %15 = vsyncpa [#allocation4], 0
    %s16 = scalar_lea.sflag [#allocation4], 1
    %17 = vsyncpa %s16, 0
    loop: start=0, step=1, limit=4
    $region2: #{tpu_custom_call.1} parent=1 // loop_pre_header
      _
    $region3: #{tpu_custom_call.1} parent=1 // loop_header
      %s19 = sphi 0, %s23
      %p20 = scmp.ge.s32.totalorder %s19, 4
      %s26 = sphi 0, %s38
      %s27 = sphi 0, %s34
      %s28 = sphi 0, %s26
      %s29 = sphi 0, %s27
      %s30 = sphi 0, %s28
      %s31 = sphi 0, %s29
      %s43 = sphi 0, %s45
      %s46 = sphi 0, %s43
      %s47 = sphi 0, %s46
      %s63 = sphi 0, %s47
      %s71 = sphi 0, %s73
      %s74 = sphi 0, %s71
      %s75 = sphi 0, %s74
      %s91 = sphi 0, %s75
      %s95 = sphi 0, %s95
      %s97 = sphi 0, %s95
      %s98 = sphi 0, %s97
      %s112 = sphi 0, %s98
      %s116 = sphi 0, %s116
      %s118 = sphi 0, %s116
      %s119 = sphi 0, %s118
      %s133 = sphi 0, %s119
      %s141 = sphi 0, %s143
      %s144 = sphi 0, %s141
      %s145 = sphi 0, %s144
      %s161 = sphi 0, %s145
    $region4: #{tpu_custom_call.1} parent=1 // loop_header_branch
      %22 = sbr.rel (%p20) target = $region8
    $region5: #{tpu_custom_call.1} parent=1 // loop_body
      %s24 = ssub.s32 %s19, 1
      %s25 = ssub.s32 %s19, 2
      %s32 = sadd.s32 1, %s27
      %p33 = scmp.ge.s32.totalorder %s32, 1
      %s34 = scalar_select %p33, 0, %s32
      %s35 = sadd.s32 1, %s26
      %s36 = scalar_select %p33, %s35, %s26
      %p37 = scmp.ge.s32.totalorder %s36, 2
      %s38 = scalar_select %p37, 0, %s36
      %s39 = ssub.s32 %s26, %s38
      %s40 = ssub.s32 %s27, %s34
      %s41 = sor.u32 %s39, %s40
      %p42 = scmp.eq.s32.totalorder %s41, 0
      %s44 = sadd.s32 %s43, 1
      %s45 = scalar_select %p42, %s43, %s44
      %p48 = pneg %p42
      %p49 = scmp.eq.s32.totalorder %s19, 1
      %p50 = por %p48, %p49
      %p51 = scmp.ne.s32.totalorder %s43, %s46
      %p52 = scmp.eq.s32.totalorder %s19, 0
      %p53 = por %p51, %p52
      %p54 = scmp.ne.s32.totalorder %s43, %s46
      %p55 = scmp.eq.s32.totalorder %s24, 1
      %p56 = por %p54, %p55
      %p57 = scmp.ne.s32.totalorder %s46, %s47
      %p58 = scmp.eq.s32.totalorder %s24, 0
      %p59 = por %p57, %p58
      %p60 = scmp.ne.s32.totalorder %s46, %s47
      %p61 = scmp.eq.s32.totalorder %s25, 1
      %p62 = por %p60, %p61
      %p64 = scmp.ne.s32.totalorder %s47, %s63
      %p65 = scmp.eq.s32.totalorder %s25, 0
      %p66 = por %p64, %p65
      %s67 = ssub.s32 %s26, %s38
      %s68 = ssub.s32 %s27, %s34
      %s69 = sor.u32 %s67, %s68
      %p70 = scmp.eq.s32.totalorder %s69, 0
      %s72 = sadd.s32 %s71, 1
      %s73 = scalar_select %p70, %s71, %s72
      %p76 = pneg %p70
      %p77 = scmp.eq.s32.totalorder %s19, 1
      %p78 = por %p76, %p77
      %p79 = scmp.ne.s32.totalorder %s71, %s74
      %p80 = scmp.eq.s32.totalorder %s19, 0
      %p81 = por %p79, %p80
      %p82 = scmp.ne.s32.totalorder %s71, %s74
      %p83 = scmp.eq.s32.totalorder %s24, 1
      %p84 = por %p82, %p83
      %p85 = scmp.ne.s32.totalorder %s74, %s75
      %p86 = scmp.eq.s32.totalorder %s24, 0
      %p87 = por %p85, %p86
      %p88 = scmp.ne.s32.totalorder %s74, %s75
      %p89 = scmp.eq.s32.totalorder %s25, 1
      %p90 = por %p88, %p89
      %p92 = scmp.ne.s32.totalorder %s75, %s91
      %p93 = scmp.eq.s32.totalorder %s25, 0
      %p94 = por %p92, %p93
      %s96 = sadd.s32 %s95, 1
      %p99 = scmp.eq.s32.totalorder %s19, 1
      %p100 = scmp.ne.s32.totalorder %s95, %s97
      %p101 = scmp.eq.s32.totalorder %s19, 0
      %p102 = por %p100, %p101
      %p103 = scmp.ne.s32.totalorder %s95, %s97
      %p104 = scmp.eq.s32.totalorder %s24, 1
      %p105 = por %p103, %p104
      %p106 = scmp.ne.s32.totalorder %s97, %s98
      %p107 = scmp.eq.s32.totalorder %s24, 0
      %p108 = por %p106, %p107
      %p109 = scmp.ne.s32.totalorder %s97, %s98
      %p110 = scmp.eq.s32.totalorder %s25, 1
      %p111 = por %p109, %p110
      %p113 = scmp.ne.s32.totalorder %s98, %s112
      %p114 = scmp.eq.s32.totalorder %s25, 0
      %p115 = por %p113, %p114
      %s117 = sadd.s32 %s116, 1
      %p120 = scmp.eq.s32.totalorder %s19, 1
      %p121 = scmp.ne.s32.totalorder %s116, %s118
      %p122 = scmp.eq.s32.totalorder %s19, 0
      %p123 = por %p121, %p122
      %p124 = scmp.ne.s32.totalorder %s116, %s118
      %p125 = scmp.eq.s32.totalorder %s24, 1
      %p126 = por %p124, %p125
      %p127 = scmp.ne.s32.totalorder %s118, %s119
      %p128 = scmp.eq.s32.totalorder %s24, 0
      %p129 = por %p127, %p128
      %p130 = scmp.ne.s32.totalorder %s118, %s119
      %p131 = scmp.eq.s32.totalorder %s25, 1
      %p132 = por %p130, %p131
      %p134 = scmp.ne.s32.totalorder %s119, %s133
      %p135 = scmp.eq.s32.totalorder %s25, 0
      %p136 = por %p134, %p135
      %s137 = ssub.s32 %s26, %s38
      %s138 = ssub.s32 %s27, %s34
      %s139 = sor.u32 %s137, %s138
      %p140 = scmp.eq.s32.totalorder %s139, 0
      %s142 = sadd.s32 %s141, 1
      %s143 = scalar_select %p140, %s141, %s142
      %p146 = pneg %p140
      %p147 = scmp.eq.s32.totalorder %s19, 1
      %p148 = por %p146, %p147
      %p149 = scmp.ne.s32.totalorder %s141, %s144
      %p150 = scmp.eq.s32.totalorder %s19, 0
      %p151 = por %p149, %p150
      %p152 = scmp.ne.s32.totalorder %s141, %s144
      %p153 = scmp.eq.s32.totalorder %s24, 1
      %p154 = por %p152, %p153
      %p155 = scmp.ne.s32.totalorder %s144, %s145
      %p156 = scmp.eq.s32.totalorder %s24, 0
      %p157 = por %p155, %p156
      %p158 = scmp.ne.s32.totalorder %s144, %s145
      %p159 = scmp.eq.s32.totalorder %s25, 1
      %p160 = por %p158, %p159
      %p162 = scmp.ne.s32.totalorder %s145, %s161
      %p163 = scmp.eq.s32.totalorder %s25, 0
      %p164 = por %p162, %p163
      %p165 = scmp.le.s32.totalorder 1, %s19
      %p166 = scmp.lt.s32.totalorder %s19, 3
      %p167 = pnand %p165, %p166
      %p168 = pneg %p167
      // Predicated region
      $region9: #{tpu_custom_call.1} parent=5 // pred_check
        _
      $region10: #{tpu_custom_call.1} parent=5 // pred_check_branch
        %170 = sbr.rel (%p167) target = $region12
      $region11: #{tpu_custom_call.1} parent=5 // pred_region
        %s171 = ssub.s32 %s19, 1
        // Predicated region
        $region13: #{tpu_custom_call.1} parent=11 // pred_check
          %p172 = pneg %p108
        $region14: #{tpu_custom_call.1} parent=11 // pred_check_branch
          %174 = sbr.rel (%p172) target = $region16
        $region15: #{tpu_custom_call.1} parent=11 // pred_region
          %s176 = ssub.s32 7168, 7168
          %177 = vsyncadd [#allocation6], %s176
          %s178 = sshll.u32 [#allocation7], 4
          %s179 = int_to_ptr.vmem [resolvable:$true] %s178
          %184 = dma.hbm_to_vmem [thread:$0]  %s2, 7168, %s179, [#allocation6], 64, 64, 4
        $region16: #{tpu_custom_call.1} parent=11 // pred_fallthru
          _
        // Predicated region
        $region17: #{tpu_custom_call.1} parent=11 // pred_check
          %p185 = pneg %p129
        $region18: #{tpu_custom_call.1} parent=11 // pred_check_branch
          %187 = sbr.rel (%p185) target = $region20
        $region19: #{tpu_custom_call.1} parent=11 // pred_region
          _
        $region20: #{tpu_custom_call.1} parent=11 // pred_fallthru
          _
      $region12: #{tpu_custom_call.1} parent=5 // pred_fallthru
        _
      %p188 = scmp.lt.s32.totalorder %s19, 2
      // Predicated region
      $region21: #{tpu_custom_call.1} parent=5 // pred_check
        %p189 = pneg %p188
      $region22: #{tpu_custom_call.1} parent=5 // pred_check_branch
        %191 = sbr.rel (%p189) target = $region24
      $region23: #{tpu_custom_call.1} parent=5 // pred_region
        // Predicated region
        $region25: #{tpu_custom_call.1} parent=23 // pred_check
          %p192 = pneg %p53
        $region26: #{tpu_custom_call.1} parent=23 // pred_check_branch
          %194 = sbr.rel (%p192) target = $region28
        $region27: #{tpu_custom_call.1} parent=23 // pred_region
          %s195 = sand.u32 %s43, 1
          %s196 = scalar_lea.sflag [#allocation3], %s195
          %s197 = sand.u32 %s43, 1
          %s198 = smul.addr %s197, 8
          %s199 = scalar_lea.vmem [#allocation2], %s198
          %s201 = ssub.s32 128, 128
          %202 = vsyncadd %s196, %s201
          %s203 = smul.addr %s27, 2
          %s204 = smul.addr %s26, 2
          %s205 = sadd.s32 %s203, %s204
          %s206 = smul.addr %s205, 64
          %s207 = scalar_lea.hbm %s0, %s206
          %s208 = sshll.u32 %s199, 4
          %s209 = int_to_ptr.vmem [resolvable:$true] %s208
          %214 = dma.hbm_to_vmem [thread:$0]  %s207, 128, %s209, %s196, 64, 64, 4
        $region28: #{tpu_custom_call.1} parent=23 // pred_fallthru
          _
        // Predicated region
        $region29: #{tpu_custom_call.1} parent=23 // pred_check
          %p215 = pneg %p81
        $region30: #{tpu_custom_call.1} parent=23 // pred_check_branch
          %217 = sbr.rel (%p215) target = $region32
        $region31: #{tpu_custom_call.1} parent=23 // pred_region
          %s218 = sand.u32 %s19, 1
          %s219 = scalar_lea.sflag [#allocation6], %s218
          %s220 = sand.u32 %s71, 1
          %s221 = smul.addr %s220, 4
          %s222 = scalar_lea.vmem [#allocation5], %s221
          %s224 = ssub.s32 64, 64
          %225 = vsyncadd %s219, %s224
          %s226 = sadd.s32 %s27, %s26
          %s227 = smul.addr %s226, 64
          %s228 = scalar_lea.hbm %s1, %s227
          %s230 = sshll.u32 %s222, 4
          %s231 = int_to_ptr.vmem [resolvable:$true] %s230
          %233 = dma.hbm_to_vmem [thread:$0]  %s228, 64, %s231, %s219
        $region32: #{tpu_custom_call.1} parent=23 // pred_fallthru
          _
      $region24: #{tpu_custom_call.1} parent=5 // pred_fallthru
        _
      %p234 = scmp.le.s32.totalorder 1, %s19
      %p235 = scmp.lt.s32.totalorder %s19, 3
      %p236 = pnand %p234, %p235
      %p237 = pneg %p236
      // Predicated region
      $region33: #{tpu_custom_call.1} parent=5 // pred_check
        _
      $region34: #{tpu_custom_call.1} parent=5 // pred_check_branch
        %239 = sbr.rel (%p236) target = $region36
      $region35: #{tpu_custom_call.1} parent=5 // pred_region
        %s240 = ssub.s32 %s19, 1
        %s241 = sand.u32 %s46, 1
        %s242 = scalar_lea.sflag [#allocation3], %s241
        %s243 = sand.u32 %s46, 1
        %s244 = smul.addr %s243, 8
        %s245 = scalar_lea.vmem [#allocation2], %s244
        // Predicated region
        $region37: #{tpu_custom_call.1} parent=35 // pred_check
          %p246 = pneg %p59
        $region38: #{tpu_custom_call.1} parent=35 // pred_check_branch
          %248 = sbr.rel (%p246) target = $region40
        $region39: #{tpu_custom_call.1} parent=35 // pred_region
          %249 = dma.done %s242, 128
        $region40: #{tpu_custom_call.1} parent=35 // pred_fallthru
          _
        %s250 = sand.u32 %s24, 1
        %s251 = scalar_lea.sflag [#allocation6], %s250
        %s252 = sand.u32 %s74, 1
        %s253 = smul.addr %s252, 4
        %s254 = scalar_lea.vmem [#allocation5], %s253
        // Predicated region
        $region41: #{tpu_custom_call.1} parent=35 // pred_check
          %p255 = pneg %p87
        $region42: #{tpu_custom_call.1} parent=35 // pred_check_branch
          %257 = sbr.rel (%p255) target = $region44
        $region43: #{tpu_custom_call.1} parent=35 // pred_region
          %258 = dma.done %s251, 64
        $region44: #{tpu_custom_call.1} parent=35 // pred_fallthru
          _
        // Predicated region
        $region45: #{tpu_custom_call.1} parent=35 // pred_check
          %p259 = pneg %p108
        $region46: #{tpu_custom_call.1} parent=35 // pred_check_branch
          %261 = sbr.rel (%p259) target = $region48
        $region47: #{tpu_custom_call.1} parent=35 // pred_region
          %262 = dma.done [#allocation6], 7168
        $region48: #{tpu_custom_call.1} parent=35 // pred_fallthru
          _
        %s263 = sand.u32 %s46, 1
        %s264 = scalar_lea.sflag [#allocation3], %s263
        %s265 = sand.u32 %s46, 1
        %s266 = smul.addr %s265, 8
        %s267 = scalar_lea.vmem [#allocation2], %s266
        %p268 = pneg %p59
        %p269 = pneg %p56
        %s270 = sand.u32 %s24, 1
        %s271 = scalar_lea.sflag [#allocation6], %s270
        %s272 = sand.u32 %s74, 1
        %s273 = smul.addr %s272, 4
        %s274 = scalar_lea.vmem [#allocation5], %s273
        %p275 = pneg %p87
        %p276 = pneg %p84
        %p277 = pneg %p108
        %p278 = pneg %p105
        %p279 = pneg %p129
        %p280 = pneg %p126
        %p281 = pneg %p157
        %p282 = pneg %p154
        %s283 = sand.u32 %s144, 1
        %s284 = scalar_lea.sflag [#allocation4], %s283
        %s285 = sand.u32 %s144, 1
        %s286 = smul.addr %s285, 16
        %s287 = scalar_lea.vmem [#allocation8], %s286
        %s288 = smul.u32 2, %s29
        %v290 = vld [vmem:[%s245] sm:$0xf]
        %v291 = vld [vmem:[%s245 + $0x4] sm:$0xf]
        %v292 = vld [vmem:[%s254] sm:$0xf]
        %v295 = vunpack.c.l.b16 %v290
        %v296 = vunpack.c.l.b16 %v291
        %v297 = vpack.c.b16 %v296, %v295
        %vm299 = vsmask.f32 7424
        %v301 = vshrl.u32 %v297, 16
        %v303 = vshll.u32 %v297, 16
        %v305 = vrot.slane %v303, 1
        %v306 = vor.u32 %v301, %v305
        %v308 = vshll.u32 %v292, 16
        %v310 = vrot.slane %v308, 1
        %v311 = vsel %vm299, %v306, %v310
        %vm314 = vcmask 1046528
        %v315 = vrot.slane %v297, 1
        %v316 = vrot.slane %v292, 1
        %v317 = vsel %vm314, %v315, %v316
        %vm319 = vsmask.f32 6400
        %v320 = vrot.slane %v301, 1
        %v321 = vrot.slane %v303, 2
        %v322 = vor.u32 %v320, %v321
        %v323 = vshrl.u32 %v292, 16
        %v325 = vrot.slane %v323, 1
        %v326 = vrot.slane %v308, 2
        %v327 = vor.u32 %v325, %v326
        %v328 = vsel %vm319, %v322, %v327
        %vm330 = vcmask 1045504
        %v331 = vrot.slane %v297, 2
        %v332 = vrot.slane %v292, 2
        %v333 = vsel %vm330, %v331, %v332
        %vm335 = vsmask.f32 5376
        %v336 = vrot.slane %v301, 2
        %v337 = vrot.slane %v303, 3
        %v338 = vor.u32 %v336, %v337
        %v339 = vrot.slane %v323, 2
        %v340 = vrot.slane %v308, 3
        %v341 = vor.u32 %v339, %v340
        %v342 = vsel %vm335, %v338, %v341
        %vm344 = vcmask 1044480
        %v345 = vrot.slane %v297, 3
        %v346 = vrot.slane %v292, 3
        %v347 = vsel %vm344, %v345, %v346
        %v349 = vld [vmem:[#allocation7] sm:$0xf]
        %v350 = vld [vmem:[#allocation7 + $0x4] sm:$0xf]
        %v351 = vld [vmem:[#allocation7 + $0x8] sm:$0xf]
        %v352 = vld [vmem:[#allocation7 + $0xc] sm:$0xf]
        %v353 = vld [vmem:[#allocation7 + $0x10] sm:$0xf]
        %v354 = vld [vmem:[#allocation7 + $0x14] sm:$0xf]
        %v355 = vld [vmem:[#allocation7 + $0x18] sm:$0xf]
        %v356 = vld [vmem:[#allocation7 + $0x1c] sm:$0xf]
        %v357 = vld [vmem:[#allocation7 + $0x20] sm:$0xf]
        %v358 = vld [vmem:[#allocation7 + $0x24] sm:$0xf]
        %v359 = vld [vmem:[#allocation7 + $0x28] sm:$0xf]
        %v360 = vld [vmem:[#allocation7 + $0x2c] sm:$0xf]
        %v361 = vld [vmem:[#allocation7 + $0x30] sm:$0xf]
        %v362 = vld [vmem:[#allocation7 + $0x34] sm:$0xf]
        %v363 = vld [vmem:[#allocation7 + $0x38] sm:$0xf]
        %v364 = vld [vmem:[#allocation7 + $0x3c] sm:$0xf]
        %v365 = vld [vmem:[#allocation7 + $0x40] sm:$0xf]
        %v366 = vld [vmem:[#allocation7 + $0x44] sm:$0xf]
        %v367 = vld [vmem:[#allocation7 + $0x48] sm:$0xf]
        %v368 = vld [vmem:[#allocation7 + $0x4c] sm:$0xf]
        %v369 = vld [vmem:[#allocation7 + $0x50] sm:$0xf]
        %v370 = vld [vmem:[#allocation7 + $0x54] sm:$0xf]
        %v371 = vld [vmem:[#allocation7 + $0x58] sm:$0xf]
        %v372 = vld [vmem:[#allocation7 + $0x5c] sm:$0xf]
        %v373 = vld [vmem:[#allocation7 + $0x60] sm:$0xf]
        %v374 = vld [vmem:[#allocation7 + $0x64] sm:$0xf]
        %v375 = vld [vmem:[#allocation7 + $0x68] sm:$0xf]
        %v376 = vld [vmem:[#allocation7 + $0x6c] sm:$0xf]
        %v377 = vld [vmem:[#allocation7 + $0x70] sm:$0xf]
        %v378 = vld [vmem:[#allocation7 + $0x74] sm:$0xf]
        %v379 = vld [vmem:[#allocation7 + $0x78] sm:$0xf]
        %v380 = vld [vmem:[#allocation7 + $0x7c] sm:$0xf]
        %v381 = vld [vmem:[#allocation7 + $0x80] sm:$0xf]
        %v382 = vld [vmem:[#allocation7 + $0x84] sm:$0xf]
        %v383 = vld [vmem:[#allocation7 + $0x88] sm:$0xf]
        %v384 = vld [vmem:[#allocation7 + $0x8c] sm:$0xf]
        %v385 = vld [vmem:[#allocation7 + $0x90] sm:$0xf]
        %v386 = vld [vmem:[#allocation7 + $0x94] sm:$0xf]
        %v387 = vld [vmem:[#allocation7 + $0x98] sm:$0xf]
        %v388 = vld [vmem:[#allocation7 + $0x9c] sm:$0xf]
        %v389 = vld [vmem:[#allocation7 + $0xa0] sm:$0xf]
        %v390 = vld [vmem:[#allocation7 + $0xa4] sm:$0xf]
        %v391 = vld [vmem:[#allocation7 + $0xa8] sm:$0xf]
        %v392 = vld [vmem:[#allocation7 + $0xac] sm:$0xf]
        %v393 = vld [vmem:[#allocation7 + $0xb0] sm:$0xf]
        %v394 = vld [vmem:[#allocation7 + $0xb4] sm:$0xf]
        %v395 = vld [vmem:[#allocation7 + $0xb8] sm:$0xf]
        %v396 = vld [vmem:[#allocation7 + $0xbc] sm:$0xf]
        %v397 = vld [vmem:[#allocation7 + $0xc0] sm:$0xf]
        %v398 = vld [vmem:[#allocation7 + $0xc4] sm:$0xf]
        %v399 = vld [vmem:[#allocation7 + $0xc8] sm:$0xf]
        %v400 = vld [vmem:[#allocation7 + $0xcc] sm:$0xf]
        %v401 = vld [vmem:[#allocation7 + $0xd0] sm:$0xf]
        %v402 = vld [vmem:[#allocation7 + $0xd4] sm:$0xf]
        %v403 = vld [vmem:[#allocation7 + $0xd8] sm:$0xf]
        %v404 = vld [vmem:[#allocation7 + $0xdc] sm:$0xf]
        %v405 = vld [vmem:[#allocation7 + $0xe0] sm:$0xf]
        %v406 = vld [vmem:[#allocation7 + $0xe4] sm:$0xf]
        %v407 = vld [vmem:[#allocation7 + $0xe8] sm:$0xf]
        %v408 = vld [vmem:[#allocation7 + $0xec] sm:$0xf]
        %v409 = vld [vmem:[#allocation7 + $0xf0] sm:$0xf]
        %v410 = vld [vmem:[#allocation7 + $0xf4] sm:$0xf]
        %v411 = vld [vmem:[#allocation7 + $0xf8] sm:$0xf]
        %v412 = vld [vmem:[#allocation7 + $0xfc] sm:$0xf]
        %v413 = vld [vmem:[#allocation7 + $0x100] sm:$0xf]
        %v414 = vld [vmem:[#allocation7 + $0x104] sm:$0xf]
        %v415 = vld [vmem:[#allocation7 + $0x108] sm:$0xf]
        %v416 = vld [vmem:[#allocation7 + $0x10c] sm:$0xf]
        %v417 = vld [vmem:[#allocation7 + $0x110] sm:$0xf]
        %v418 = vld [vmem:[#allocation7 + $0x114] sm:$0xf]
        %v419 = vld [vmem:[#allocation7 + $0x118] sm:$0xf]
        %v420 = vld [vmem:[#allocation7 + $0x11c] sm:$0xf]
        %v421 = vld [vmem:[#allocation7 + $0x120] sm:$0xf]
        %v422 = vld [vmem:[#allocation7 + $0x124] sm:$0xf]
        %v423 = vld [vmem:[#allocation7 + $0x128] sm:$0xf]
        %v424 = vld [vmem:[#allocation7 + $0x12c] sm:$0xf]
        %v425 = vld [vmem:[#allocation7 + $0x130] sm:$0xf]
        %v426 = vld [vmem:[#allocation7 + $0x134] sm:$0xf]
        %v427 = vld [vmem:[#allocation7 + $0x138] sm:$0xf]
        %v428 = vld [vmem:[#allocation7 + $0x13c] sm:$0xf]
        %v429 = vld [vmem:[#allocation7 + $0x140] sm:$0xf]
        %v430 = vld [vmem:[#allocation7 + $0x144] sm:$0xf]
        %v431 = vld [vmem:[#allocation7 + $0x148] sm:$0xf]
        %v432 = vld [vmem:[#allocation7 + $0x14c] sm:$0xf]
        %v433 = vld [vmem:[#allocation7 + $0x150] sm:$0xf]
        %v434 = vld [vmem:[#allocation7 + $0x154] sm:$0xf]
        %v435 = vld [vmem:[#allocation7 + $0x158] sm:$0xf]
        %v436 = vld [vmem:[#allocation7 + $0x15c] sm:$0xf]
        %v437 = vld [vmem:[#allocation7 + $0x160] sm:$0xf]
        %v438 = vld [vmem:[#allocation7 + $0x164] sm:$0xf]
        %v439 = vld [vmem:[#allocation7 + $0x168] sm:$0xf]
        %v440 = vld [vmem:[#allocation7 + $0x16c] sm:$0xf]
        %v441 = vld [vmem:[#allocation7 + $0x170] sm:$0xf]
        %v442 = vld [vmem:[#allocation7 + $0x174] sm:$0xf]
        %v443 = vld [vmem:[#allocation7 + $0x178] sm:$0xf]
        %v444 = vld [vmem:[#allocation7 + $0x17c] sm:$0xf]
        %v445 = vld [vmem:[#allocation7 + $0x180] sm:$0xf]
        %v446 = vld [vmem:[#allocation7 + $0x184] sm:$0xf]
        %v447 = vld [vmem:[#allocation7 + $0x188] sm:$0xf]
        %v448 = vld [vmem:[#allocation7 + $0x18c] sm:$0xf]
        %v449 = vld [vmem:[#allocation7 + $0x190] sm:$0xf]
        %v450 = vld [vmem:[#allocation7 + $0x194] sm:$0xf]
        %v451 = vld [vmem:[#allocation7 + $0x198] sm:$0xf]
        %v452 = vld [vmem:[#allocation7 + $0x19c] sm:$0xf]
        %v453 = vld [vmem:[#allocation7 + $0x1a0] sm:$0xf]
        %v454 = vld [vmem:[#allocation7 + $0x1a4] sm:$0xf]
        %v455 = vld [vmem:[#allocation7 + $0x1a8] sm:$0xf]
        %v456 = vld [vmem:[#allocation7 + $0x1ac] sm:$0xf]
        %v457 = vld [vmem:[#allocation7 + $0x1b0] sm:$0xf]
        %v458 = vld [vmem:[#allocation7 + $0x1b4] sm:$0xf]
        %v459 = vld [vmem:[#allocation7 + $0x1b8] sm:$0xf]
        %v460 = vld [vmem:[#allocation7 + $0x1bc] sm:$0xf]
        %v461 = vld [vmem:[%s3] sm:$0x1]
        %v463 = vlaneseq
        %v464 = vshrl.u32 %v463, 7
        %v465 = vsub.s32 0, %v464
        %v466 = vrot.slane %v461, %v465
        %v580 = vunpack.c.l.b16 %v349
        %v581 = vunpack.c.l.b16 %v350
        %v582 = vunpack.c.l.b16 %v351
        %v583 = vunpack.c.l.b16 %v352
        %v584 = vunpack.c.l.b16 %v353
        %v585 = vunpack.c.l.b16 %v354
        %v586 = vunpack.c.l.b16 %v355
        %v587 = vunpack.c.l.b16 %v356
        %v588 = vunpack.c.l.b16 %v357
        %v589 = vunpack.c.l.b16 %v358
        %v590 = vunpack.c.l.b16 %v359
        %v591 = vunpack.c.l.b16 %v360
        %v592 = vunpack.c.l.b16 %v361
        %v593 = vunpack.c.l.b16 %v362
        %v594 = vunpack.c.l.b16 %v363
        %v595 = vunpack.c.l.b16 %v364
        %v596 = vunpack.c.l.b16 %v365
        %v597 = vunpack.c.l.b16 %v366
        %v598 = vunpack.c.l.b16 %v367
        %v599 = vunpack.c.l.b16 %v368
        %v600 = vunpack.c.l.b16 %v369
        %v601 = vunpack.c.l.b16 %v370
        %v602 = vunpack.c.l.b16 %v371
        %v603 = vunpack.c.l.b16 %v372
        %v604 = vunpack.c.l.b16 %v373
        %v605 = vunpack.c.l.b16 %v374
        %v606 = vunpack.c.l.b16 %v375
        %v607 = vunpack.c.l.b16 %v376
        %v608 = vunpack.c.l.b16 %v377
        %v609 = vunpack.c.l.b16 %v378
        %v610 = vunpack.c.l.b16 %v379
        %v611 = vunpack.c.l.b16 %v380
        %v612 = vunpack.c.l.b16 %v381
        %v613 = vunpack.c.l.b16 %v382
        %v614 = vunpack.c.l.b16 %v383
        %v615 = vunpack.c.l.b16 %v384
        %v616 = vunpack.c.l.b16 %v385
        %v617 = vunpack.c.l.b16 %v386
        %v618 = vunpack.c.l.b16 %v387
        %v619 = vunpack.c.l.b16 %v388
        %v620 = vunpack.c.l.b16 %v389
        %v621 = vunpack.c.l.b16 %v390
        %v622 = vunpack.c.l.b16 %v391
        %v623 = vunpack.c.l.b16 %v392
        %v624 = vunpack.c.l.b16 %v393
        %v625 = vunpack.c.l.b16 %v394
        %v626 = vunpack.c.l.b16 %v395
        %v627 = vunpack.c.l.b16 %v396
        %v628 = vunpack.c.l.b16 %v397
        %v629 = vunpack.c.l.b16 %v398
        %v630 = vunpack.c.l.b16 %v399
        %v631 = vunpack.c.l.b16 %v400
        %v632 = vunpack.c.l.b16 %v401
        %v633 = vunpack.c.l.b16 %v402
        %v634 = vunpack.c.l.b16 %v403
        %v635 = vunpack.c.l.b16 %v404
        %v636 = vunpack.c.l.b16 %v405
        %v637 = vunpack.c.l.b16 %v406
        %v638 = vunpack.c.l.b16 %v407
        %v639 = vunpack.c.l.b16 %v408
        %v640 = vunpack.c.l.b16 %v409
        %v641 = vunpack.c.l.b16 %v410
        %v642 = vunpack.c.l.b16 %v411
        %v643 = vunpack.c.l.b16 %v412
        %v644 = vunpack.c.l.b16 %v413
        %v645 = vunpack.c.l.b16 %v414
        %v646 = vunpack.c.l.b16 %v415
        %v647 = vunpack.c.l.b16 %v416
        %v648 = vunpack.c.l.b16 %v417
        %v649 = vunpack.c.l.b16 %v418
        %v650 = vunpack.c.l.b16 %v419
        %v651 = vunpack.c.l.b16 %v420
        %v652 = vunpack.c.l.b16 %v421
        %v653 = vunpack.c.l.b16 %v422
        %v654 = vunpack.c.l.b16 %v423
        %v655 = vunpack.c.l.b16 %v424
        %v656 = vunpack.c.l.b16 %v425
        %v657 = vunpack.c.l.b16 %v426
        %v658 = vunpack.c.l.b16 %v427
        %v659 = vunpack.c.l.b16 %v428
        %v660 = vunpack.c.l.b16 %v429
        %v661 = vunpack.c.l.b16 %v430
        %v662 = vunpack.c.l.b16 %v431
        %v663 = vunpack.c.l.b16 %v432
        %v664 = vunpack.c.l.b16 %v433
        %v665 = vunpack.c.l.b16 %v434
        %v666 = vunpack.c.l.b16 %v435
        %v667 = vunpack.c.l.b16 %v436
        %v668 = vunpack.c.l.b16 %v437
        %v669 = vunpack.c.l.b16 %v438
        %v670 = vunpack.c.l.b16 %v439
        %v671 = vunpack.c.l.b16 %v440
        %v672 = vunpack.c.l.b16 %v441
        %v673 = vunpack.c.l.b16 %v442
        %v674 = vunpack.c.l.b16 %v443
        %v675 = vunpack.c.l.b16 %v444
        %v676 = vunpack.c.l.b16 %v445
        %v677 = vunpack.c.l.b16 %v446
        %v678 = vunpack.c.l.b16 %v447
        %v679 = vunpack.c.l.b16 %v448
        %v680 = vunpack.c.l.b16 %v449
        %v681 = vunpack.c.l.b16 %v450
        %v682 = vunpack.c.l.b16 %v451
        %v683 = vunpack.c.l.b16 %v452
        %v684 = vunpack.c.l.b16 %v453
        %v685 = vunpack.c.l.b16 %v454
        %v686 = vunpack.c.l.b16 %v455
        %v687 = vunpack.c.l.b16 %v456
        %v688 = vunpack.c.l.b16 %v457
        %v689 = vunpack.c.l.b16 %v458
        %v690 = vunpack.c.l.b16 %v459
        %v691 = vunpack.c.l.b16 %v460
        %v692 = vpack.c.b16 %v581, %v580
        %v693 = vpack.c.b16 %v583, %v582
        %v694 = vpack.c.b16 %v585, %v584
        %v695 = vpack.c.b16 %v587, %v586
        %v696 = vpack.c.b16 %v589, %v588
        %v697 = vpack.c.b16 %v591, %v590
        %v698 = vpack.c.b16 %v593, %v592
        %v699 = vpack.c.b16 %v595, %v594
        %v700 = vpack.c.b16 %v597, %v596
        %v701 = vpack.c.b16 %v599, %v598
        %v702 = vpack.c.b16 %v601, %v600
        %v703 = vpack.c.b16 %v603, %v602
        %v704 = vpack.c.b16 %v605, %v604
        %v705 = vpack.c.b16 %v607, %v606
        %v706 = vpack.c.b16 %v609, %v608
        %v707 = vpack.c.b16 %v611, %v610
        %v708 = vpack.c.b16 %v613, %v612
        %v709 = vpack.c.b16 %v615, %v614
        %v710 = vpack.c.b16 %v617, %v616
        %v711 = vpack.c.b16 %v619, %v618
        %v712 = vpack.c.b16 %v621, %v620
        %v713 = vpack.c.b16 %v623, %v622
        %v714 = vpack.c.b16 %v625, %v624
        %v715 = vpack.c.b16 %v627, %v626
        %v716 = vpack.c.b16 %v629, %v628
        %v717 = vpack.c.b16 %v631, %v630
        %v718 = vpack.c.b16 %v633, %v632
        %v719 = vpack.c.b16 %v635, %v634
        %v720 = vpack.c.b16 %v637, %v636
        %v721 = vpack.c.b16 %v639, %v638
        %v722 = vpack.c.b16 %v641, %v640
        %v723 = vpack.c.b16 %v643, %v642
        %v724 = vpack.c.b16 %v645, %v644
        %v725 = vpack.c.b16 %v647, %v646
        %v726 = vpack.c.b16 %v649, %v648
        %v727 = vpack.c.b16 %v651, %v650
        %v728 = vpack.c.b16 %v653, %v652
        %v729 = vpack.c.b16 %v655, %v654
        %v730 = vpack.c.b16 %v657, %v656
        %v731 = vpack.c.b16 %v659, %v658
        %v732 = vpack.c.b16 %v661, %v660
        %v733 = vpack.c.b16 %v663, %v662
        %v734 = vpack.c.b16 %v665, %v664
        %v735 = vpack.c.b16 %v667, %v666
        %v736 = vpack.c.b16 %v669, %v668
        %v737 = vpack.c.b16 %v671, %v670
        %v738 = vpack.c.b16 %v673, %v672
        %v739 = vpack.c.b16 %v675, %v674
        %v740 = vpack.c.b16 %v677, %v676
        %v741 = vpack.c.b16 %v679, %v678
        %v742 = vpack.c.b16 %v681, %v680
        %v743 = vpack.c.b16 %v683, %v682
        %v744 = vpack.c.b16 %v685, %v684
        %v745 = vpack.c.b16 %v687, %v686
        %v746 = vpack.c.b16 %v689, %v688
        %v747 = vpack.c.b16 %v691, %v690
        %804 = vmatprep.subr.bf16.mxu0 0
        %805 = vmatpush1.bf16.msra.mxu0 %v699
        %806 = vmatprep.subr.bf16.mxu0 0
        %807 = vmatpush1.bf16.msra.mxu0 %v698
        %808 = vmatprep.subr.bf16.mxu0 0
        %809 = vmatpush1.bf16.msra.mxu0 %v697
        %810 = vmatprep.subr.bf16.mxu0 0
        %811 = vmatpush1.bf16.msra.mxu0 %v696
        %812 = vmatprep.subr.bf16.mxu0 0
        %813 = vmatpush1.bf16.msra.mxu0 %v695
        %814 = vmatprep.subr.bf16.mxu0 0
        %815 = vmatpush1.bf16.msra.mxu0 %v694
        %816 = vmatprep.subr.bf16.mxu0 0
        %817 = vmatpush1.bf16.msra.mxu0 %v693
        %818 = vmatprep.subr.bf16.mxu0 0
        %819 = vmatpush1.bf16.msra.mxu0 %v692
        %820 = vmatprep.subr.bf16.mxu0 0
        %821 = vmatpush2.bf16.msra.mxu0 %v707
        %822 = vmatprep.subr.bf16.mxu0 0
        %823 = vmatpush2.bf16.msra.mxu0 %v706
        %824 = vmatprep.subr.bf16.mxu0 0
        %825 = vmatpush2.bf16.msra.mxu0 %v705
        %826 = vmatprep.subr.bf16.mxu0 0
        %827 = vmatpush2.bf16.msra.mxu0 %v704
        %828 = vmatprep.subr.bf16.mxu0 0
        %829 = vmatpush2.bf16.msra.mxu0 %v703
        %830 = vmatprep.subr.bf16.mxu0 0
        %831 = vmatpush2.bf16.msra.mxu0 %v702
        %832 = vmatprep.subr.bf16.mxu0 0
        %833 = vmatpush2.bf16.msra.mxu0 %v701
        %834 = vmatprep.subr.bf16.mxu0 0
        %835 = vmatpush2.bf16.msra.mxu0 %v700
        %836 = vmatprep.mubr.bf16.mxu0 %v311
        %837 = vmatmul.mubr.bf16.gmra.mxu0 %v297
        %v838 = vpop.f32.mrf.mxu0
        %v839 = vadd.f32 %v466, %v838
        %v840 = vpop.f32.mrf.mxu0
        %v841 = vpop.f32.mrf.mxu0
        %v842 = vadd.f32 %v466, %v841
        %v843 = vpop.f32.mrf.mxu0
        %844 = vdwg.mxu0
        %845 = vmatprep.subr.bf16.mxu0 0
        %846 = vmatpush1.bf16.msra.mxu0 %v715
        %847 = vmatprep.subr.bf16.mxu0 0
        %848 = vmatpush1.bf16.msra.mxu0 %v714
        %849 = vmatprep.subr.bf16.mxu0 0
        %850 = vmatpush1.bf16.msra.mxu0 %v713
        %851 = vmatprep.subr.bf16.mxu0 0
        %852 = vmatpush1.bf16.msra.mxu0 %v712
        %853 = vmatprep.subr.bf16.mxu0 0
        %854 = vmatpush1.bf16.msra.mxu0 %v711
        %855 = vmatprep.subr.bf16.mxu0 0
        %856 = vmatpush1.bf16.msra.mxu0 %v710
        %857 = vmatprep.subr.bf16.mxu0 0
        %858 = vmatpush1.bf16.msra.mxu0 %v709
        %859 = vmatprep.subr.bf16.mxu0 0
        %860 = vmatpush1.bf16.msra.mxu0 %v708
        %861 = vmatprep.subr.bf16.mxu0 0
        %862 = vmatpush2.bf16.msra.mxu0 %v723
        %863 = vmatprep.subr.bf16.mxu0 0
        %864 = vmatpush2.bf16.msra.mxu0 %v722
        %865 = vmatprep.subr.bf16.mxu0 0
        %866 = vmatpush2.bf16.msra.mxu0 %v721
        %867 = vmatprep.subr.bf16.mxu0 0
        %868 = vmatpush2.bf16.msra.mxu0 %v720
        %869 = vmatprep.subr.bf16.mxu0 0
        %870 = vmatpush2.bf16.msra.mxu0 %v719
        %871 = vmatprep.subr.bf16.mxu0 0
        %872 = vmatpush2.bf16.msra.mxu0 %v718
        %873 = vmatprep.subr.bf16.mxu0 0
        %874 = vmatpush2.bf16.msra.mxu0 %v717
        %875 = vmatprep.subr.bf16.mxu0 0
        %876 = vmatpush2.bf16.msra.mxu0 %v716
        %877 = vmatprep.mubr.bf16.mxu0 %v328
        %878 = vmatmul.mubr.bf16.gmra.mxu0 %v317
        %v879 = vpop.f32.mrf.mxu0
        %v880 = vadd.f32 %v839, %v879
        %v881 = vpop.f32.mrf.mxu0
        %v882 = vpop.f32.mrf.mxu0
        %v883 = vadd.f32 %v842, %v882
        %v884 = vpop.f32.mrf.mxu0
        %885 = vdwg.mxu0
        %886 = vmatprep.subr.bf16.mxu0 0
        %887 = vmatpush1.bf16.msra.mxu0 %v731
        %888 = vmatprep.subr.bf16.mxu0 0
        %889 = vmatpush1.bf16.msra.mxu0 %v730
        %890 = vmatprep.subr.bf16.mxu0 0
        %891 = vmatpush1.bf16.msra.mxu0 %v729
        %892 = vmatprep.subr.bf16.mxu0 0
        %893 = vmatpush1.bf16.msra.mxu0 %v728
        %894 = vmatprep.subr.bf16.mxu0 0
        %895 = vmatpush1.bf16.msra.mxu0 %v727
        %896 = vmatprep.subr.bf16.mxu0 0
        %897 = vmatpush1.bf16.msra.mxu0 %v726
        %898 = vmatprep.subr.bf16.mxu0 0
        %899 = vmatpush1.bf16.msra.mxu0 %v725
        %900 = vmatprep.subr.bf16.mxu0 0
        %901 = vmatpush1.bf16.msra.mxu0 %v724
        %902 = vmatprep.subr.bf16.mxu0 0
        %903 = vmatpush2.bf16.msra.mxu0 %v739
        %904 = vmatprep.subr.bf16.mxu0 0
        %905 = vmatpush2.bf16.msra.mxu0 %v738
        %906 = vmatprep.subr.bf16.mxu0 0
        %907 = vmatpush2.bf16.msra.mxu0 %v737
        %908 = vmatprep.subr.bf16.mxu0 0
        %909 = vmatpush2.bf16.msra.mxu0 %v736
        %910 = vmatprep.subr.bf16.mxu0 0
        %911 = vmatpush2.bf16.msra.mxu0 %v735
        %912 = vmatprep.subr.bf16.mxu0 0
        %913 = vmatpush2.bf16.msra.mxu0 %v734
        %914 = vmatprep.subr.bf16.mxu0 0
        %915 = vmatpush2.bf16.msra.mxu0 %v733
        %916 = vmatprep.subr.bf16.mxu0 0
        %917 = vmatpush2.bf16.msra.mxu0 %v732
        %918 = vmatprep.mubr.bf16.mxu0 %v342
        %919 = vmatmul.mubr.bf16.gmra.mxu0 %v333
        %v920 = vpop.f32.mrf.mxu0
        %v921 = vadd.f32 %v880, %v920
        %v922 = vpop.f32.mrf.mxu0
        %v923 = vpop.f32.mrf.mxu0
        %v924 = vadd.f32 %v883, %v923
        %v925 = vpop.f32.mrf.mxu0
        %926 = vdwg.mxu0
        %927 = vmatprep.subr.bf16.mxu0 0
        %928 = vmatpush1.bf16.msra.mxu0 %v747
        %929 = vmatprep.subr.bf16.mxu0 0
        %930 = vmatpush1.bf16.msra.mxu0 %v746
        %931 = vmatprep.subr.bf16.mxu0 0
        %932 = vmatpush1.bf16.msra.mxu0 %v745
        %933 = vmatprep.subr.bf16.mxu0 0
        %934 = vmatpush1.bf16.msra.mxu0 %v744
        %935 = vmatprep.subr.bf16.mxu0 0
        %936 = vmatpush1.bf16.msra.mxu0 %v743
        %937 = vmatprep.subr.bf16.mxu0 0
        %938 = vmatpush1.bf16.msra.mxu0 %v742
        %939 = vmatprep.subr.bf16.mxu0 0
        %940 = vmatpush1.bf16.msra.mxu0 %v741
        %941 = vmatprep.subr.bf16.mxu0 0
        %942 = vmatpush1.bf16.msra.mxu0 %v740
        %943 = vmatprep.subr.bf16.mxu0 0
        %944 = vmatpush2.bf16.msra.mxu0 0
        %945 = vmatprep.subr.bf16.mxu0 0
        %946 = vmatpush2.bf16.msra.mxu0 0
        %947 = vmatprep.subr.bf16.mxu0 0
        %948 = vmatpush2.bf16.msra.mxu0 0
        %949 = vmatprep.subr.bf16.mxu0 0
        %950 = vmatpush2.bf16.msra.mxu0 0
        %951 = vmatprep.subr.bf16.mxu0 0
        %952 = vmatpush2.bf16.msra.mxu0 0
        %953 = vmatprep.subr.bf16.mxu0 0
        %954 = vmatpush2.bf16.msra.mxu0 0
        %955 = vmatprep.subr.bf16.mxu0 0
        %956 = vmatpush2.bf16.msra.mxu0 0
        %957 = vmatprep.subr.bf16.mxu0 0
        %958 = vmatpush2.bf16.msra.mxu0 0
        %959 = vmatprep.mubr.bf16.mxu0 0
        %960 = vmatmul.mubr.bf16.gmra.mxu0 %v347
        %v961 = vpop.f32.mrf.mxu0
        %v962 = vadd.f32 %v921, %v961
        %v963 = vpop.f32.mrf.mxu0
        %v964 = vpop.f32.mrf.mxu0
        %v965 = vadd.f32 %v924, %v964
        %v966 = vpop.f32.mrf.mxu0
        %967 = vdwg.mxu0
        %v968 = vmax.f32 %v962, 0.0
        %v969 = vmax.f32 %v965, 0.0
        %970 = vst [vmem:[%s287] sm:$0xff] %v968
        %971 = vst [vmem:[%s287 + $0x8] sm:$0xff] %v969
        %s972 = sand.u32 %s144, 1
        %s973 = scalar_lea.sflag [#allocation4], %s972
        %s974 = sand.u32 %s144, 1
        %s975 = smul.addr %s974, 16
        %s976 = scalar_lea.vmem [#allocation8], %s975
        // Predicated region
        $region49: #{tpu_custom_call.1} parent=35 // pred_check
          %p977 = pneg %p154
        $region50: #{tpu_custom_call.1} parent=35 // pred_check_branch
          %979 = sbr.rel (%p977) target = $region52
        $region51: #{tpu_custom_call.1} parent=35 // pred_region
          %s980 = smul.u32 2, %s29
          %s982 = ssub.s32 256, 256
          %983 = vsyncadd %s973, %s982
          %s984 = smul.addr %s28, 2
          %s985 = sadd.s32 %s980, %s984
          %s986 = smul.addr %s985, 128
          %s987 = scalar_lea.hbm %s4, %s986
          %s988 = sshll.u32 %s976, 4
          %s989 = int_to_ptr.vmem [resolvable:$true] %s988
          %994 = dma.vmem_to_hbm [thread:$0]  %s989, 256, %s987, %s973, 128, 128, 8
        $region52: #{tpu_custom_call.1} parent=35 // pred_fallthru
          _
      $region36: #{tpu_custom_call.1} parent=5 // pred_fallthru
        _
      %p995 = scmp.le.s32.totalorder 2, %s19
      // Predicated region
      $region53: #{tpu_custom_call.1} parent=5 // pred_check
        %p996 = pneg %p995
      $region54: #{tpu_custom_call.1} parent=5 // pred_check_branch
        %998 = sbr.rel (%p996) target = $region56
      $region55: #{tpu_custom_call.1} parent=5 // pred_region
        %s999 = ssub.s32 %s19, 2
        // Predicated region
        $region57: #{tpu_custom_call.1} parent=55 // pred_check
          %p1000 = pneg %p160
        $region58: #{tpu_custom_call.1} parent=55 // pred_check_branch
          %1002 = sbr.rel (%p1000) target = $region60
        $region59: #{tpu_custom_call.1} parent=55 // pred_region
          %s1003 = sand.u32 %s145, 1
          %s1004 = scalar_lea.sflag [#allocation4], %s1003
          %s1005 = sand.u32 %s145, 1
          %s1006 = smul.addr %s1005, 16
          %s1007 = scalar_lea.vmem [#allocation8], %s1006
          %1008 = dma.done %s1004, 256
        $region60: #{tpu_custom_call.1} parent=55 // pred_fallthru
          _
      $region56: #{tpu_custom_call.1} parent=5 // pred_fallthru
        _
    $region6: #{tpu_custom_call.1} parent=1 // loop_footer
      %s23 = sadd.s32 1, %s19
    $region7: #{tpu_custom_call.1} parent=1 // loop_footer_branch
      %18 = sbr.rel target = $region3
    $region8: #{tpu_custom_call.1} parent=1 // loop_exit
      _
    %1009 = vsyncpa [#allocation3], 1
    %s1010 = scalar_lea.sflag [#allocation3], 1
    %1011 = vsyncpa %s1010, 1
    %1012 = vsyncpa [#allocation6], 1
    %s1013 = scalar_lea.sflag [#allocation6], 1
    %1014 = vsyncpa %s1013, 1
    %1015 = vsyncpa [#allocation4], 1
    %s1016 = scalar_lea.sflag [#allocation4], 1
    %1017 = vsyncpa %s1016, 1

</llo_original>
